<compile_context>
chip_gen: v7x
topology: tpu7x:2x2x1
jax: 0.10.0
libtpu: 0.0.40
codegen_flags: <defaults>
</compile_context>

<pallas_src>
import math

import jax
import jax.numpy as jnp
from jax.experimental import pallas as pl
from jax.experimental.pallas import tpu as pltpu


def _round_up(x, m):
    return (x + m - 1) // m * m


def _make_layer_kernel(needs_mask: bool, valid_last: int):
    """Kernel factory.

    needs_mask: whether the last K tile contains padded lanes.
    valid_last: number of valid lanes in the last K tile (static).
    """

    def kernel(w_over_ref, w_under_ref, rhs_ref,
               c_under_ref, c_over_ref, bounds_ref,
               mnu_ref, mxo_ref, mxu_ref):
        kb = pl.program_id(1)
        nk = pl.num_programs(1)

        # Reset the running-bound accumulators at the first K tile of each
        # output-row tile.
        @pl.when(kb == 0)
        def _init():
            mnu_ref[...] = jnp.full(mnu_ref.shape, jnp.inf, jnp.float32)
            mxo_ref[...] = jnp.full(mxo_ref.shape, -jnp.inf, jnp.float32)
            mxu_ref[...] = jnp.full(mxu_ref.shape, -jnp.inf, jnp.float32)

        # Two MXU dots over the stacked contraction axis [over; under; ones];
        # bias is folded in as an extra contraction column, so the results go
        # straight to the output refs (no intermediate, no bias add).
        rhs = rhs_ref[...]                                       # (C, TK)
        c_over = jnp.dot(w_over_ref[...], rhs,
                         preferred_element_type=jnp.float32,
                         precision=jax.lax.Precision.HIGHEST)    # (TS, TK)
        c_under = jnp.dot(w_under_ref[...], rhs,
                          preferred_element_type=jnp.float32,
                          precision=jax.lax.Precision.HIGHEST)   # (TS, TK)
        c_over_ref[...] = c_over
        c_under_ref[...] = c_under

        def _update(cu, co):
            mnu_ref[...] = jnp.minimum(
                mnu_ref[...], jnp.min(cu, axis=1, keepdims=True))
            mxo_ref[...] = jnp.maximum(
                mxo_ref[...], jnp.max(co, axis=1, keepdims=True))
            mxu_ref[...] = jnp.maximum(
                mxu_ref[...], jnp.max(cu, axis=1, keepdims=True))

        if needs_mask:
            # Non-final K tiles have no padded lanes: reduce directly.
            @pl.when(kb < nk - 1)
            def _plain():
                _update(c_under, c_over)

            # Final K tile: mask padding lanes so they never pollute min/max.
            @pl.when(kb == nk - 1)
            def _masked():
                tk = c_over.shape[1]
                lane = jax.lax.broadcasted_iota(jnp.int32, (1, tk), 1)
                valid = lane < valid_last
                mnu_ref[...] = jnp.minimum(
                    mnu_ref[...],
                    jnp.min(jnp.where(valid, c_under, jnp.inf),
                            axis=1, keepdims=True))
                mxo_ref[...] = jnp.maximum(
                    mxo_ref[...],
                    jnp.max(jnp.where(valid, c_over, -jnp.inf),
                            axis=1, keepdims=True))
                mxu_ref[...] = jnp.maximum(
                    mxu_ref[...],
                    jnp.max(jnp.where(valid, c_under, -jnp.inf),
                            axis=1, keepdims=True))
        else:
            _update(c_under, c_over)

        # Single lane-padded bounds store at the last K tile:
        # lane 0 = min(combined_under), lane 1 = max(combined_over),
        # lane 2 = max(combined_under); remaining lanes are zero padding.
        @pl.when(kb == nk - 1)
        def _finalize():
            ts = bounds_ref.shape[0]
            lane = jax.lax.broadcasted_iota(jnp.int32, (ts, 128), 1)
            b = jnp.where(lane == 0, mnu_ref[...], 0.0)
            b = jnp.where(lane == 1, mxo_ref[...], b)
            b = jnp.where(lane == 2, mxu_ref[...], b)
            bounds_ref[...] = b

    return kernel


@jax.jit
def layer_module_forward(inputs_under, inputs_over, weights, biases):
    """Pallas TPU forward of the Bern-NN layer weighted sum.

    inputs_under / inputs_over: (N_in, *coeff_dims) stacked Bernstein tensors.
    weights: (size, N_in).  biases: (size,).
    Returns (bern_under (size, *coeff_dims), bern_over (size, *coeff_dims),
             bounds (size, 2) = [min under, max over],
             bounds_lower_berns (size, 2) = [min under, max under]).
    """
    n_in = inputs_under.shape[0]
    coeff_shape = inputs_under.shape[1:]
    k = int(math.prod(coeff_shape))
    size = weights.shape[0]

    # ---- Tile sizes -------------------------------------------------------
    # Row tile: up to 256, but keep >= 2 row tiles whenever size >= 16 so the
    # "parallel" row axis can be sharded across v7x's two TensorCores.
    ts = min(256, _round_up(size, 8))
    s_pad = _round_up(size, ts)
    if size >= 16 and s_pad // ts < 2:
        ts = _round_up((size + 1) // 2, 8)
        s_pad = _round_up(size, ts)

    # K (flattened coefficient axis) is the lane axis; 2048 f32 lanes per tile
    # keeps the double-buffered footprint ~10-25 MiB, well inside even v7x's
    # 64 MiB per-TC VMEM while getting the HBM pipeline near roofline.
    tk = min(2048, _round_up(k, 128))
    k_pad = _round_up(k, tk)
    needs_mask = k != k_pad
    valid_last = k - (k_pad - tk)          # valid lanes in the last K tile

    # Stacked contraction axis: [over-block | under-block | bias column + pad].
    n_pad = _round_up(n_in, 8)
    c_dim = 2 * n_pad + 8

    # ---- Operand packing (wrapper-side, plain XLA ops) --------------------
    wf = weights.astype(jnp.float32)
    wp = jnp.maximum(wf, 0.0)              # relu(W)
    wn = jnp.minimum(wf, 0.0)              # -relu(-W)
    bf = biases.astype(jnp.float32)

    def _stack_w(a, b):
        m = jnp.zeros((s_pad, c_dim), jnp.float32)
        m = m.at[:size, :n_in].set(a)
        m = m.at[:size, n_pad:n_pad + n_in].set(b)
        m = m.at[:size, 2 * n_pad].set(bf)   # bias folded into the matmul
        return m

    w_over_stk = _stack_w(wp, wn)            # multiplies [over; under; 1]
    w_under_stk = _stack_w(wn, wp)

    rhs = jnp.zeros((c_dim, k_pad), jnp.float32)
    rhs = rhs.at[:n_in, :k].set(inputs_over.reshape(n_in, k).astype(jnp.float32))
    rhs = rhs.at[n_pad:n_pad + n_in, :k].set(
        inputs_under.reshape(n_in, k).astype(jnp.float32))
    rhs = rhs.at[2 * n_pad, :].set(1.0)       # ones row -> bias contribution
    # NOTE: padded K lanes of the (s_pad, k_pad) outputs therefore hold the
    # bias value, not zero; they are sliced off below.

    # ---- VMEM budget derived from the actual tile sizes -------------------
    block_bytes = 4 * (2 * ts * c_dim       # two resident weight tiles
                       + c_dim * tk         # stacked RHS tile
                       + 2 * ts * tk        # two output tiles
                       + ts * 128)          # packed bounds tile
    vmem_limit = max(16 * 1024 * 1024,
                     min(2 * block_bytes + (4 << 20), 60 * 1024 * 1024))

    grid = (s_pad // ts, k_pad // tk)
    out_shapes = (
        jax.ShapeDtypeStruct((s_pad, k_pad), jnp.float32),   # combined_under
        jax.ShapeDtypeStruct((s_pad, k_pad), jnp.float32),   # combined_over
        jax.ShapeDtypeStruct((s_pad, 128), jnp.float32),     # packed bounds
    )
    c_under_p, c_over_p, bounds_p = pl.pallas_call(
        _make_layer_kernel(needs_mask, valid_last),
        out_shape=out_shapes,
        grid_spec=pltpu.PrefetchScalarGridSpec(
            num_scalar_prefetch=0,
            grid=grid,
            in_specs=[
                pl.BlockSpec((ts, c_dim), lambda i, j: (i, 0)),   # [wp|wn|b]
                pl.BlockSpec((ts, c_dim), lambda i, j: (i, 0)),   # [wn|wp|b]
                pl.BlockSpec((c_dim, tk), lambda i, j: (0, j)),   # [over;under;1]
            ],
            out_specs=(
                pl.BlockSpec((ts, tk), lambda i, j: (i, j)),
                pl.BlockSpec((ts, tk), lambda i, j: (i, j)),
                pl.BlockSpec((ts, 128), lambda i, j: (i, 0)),
            ),
            scratch_shapes=[
                pltpu.VMEM((ts, 1), jnp.float32),   # running min(under)
                pltpu.VMEM((ts, 1), jnp.float32),   # running max(over)
                pltpu.VMEM((ts, 1), jnp.float32),   # running max(under)
            ],
        ),
        compiler_params=pltpu.CompilerParams(
            dimension_semantics=("parallel", "arbitrary"),
            vmem_limit_bytes=vmem_limit,
        ),
    )(w_over_stk, w_under_stk, rhs)

    bern_under = c_under_p[:size, :k].reshape((size,) + coeff_shape)
    bern_over = c_over_p[:size, :k].reshape((size,) + coeff_shape)
    bounds = jnp.stack([bounds_p[:size, 0], bounds_p[:size, 1]], axis=1)
    bounds_lower_berns = jnp.stack([bounds_p[:size, 0], bounds_p[:size, 2]], axis=1)
    # TODO(synk): SumModule's degree-mismatch branch needs `bern_multiply`
    # (degree-elevating Bernstein product), external to the provided source;
    # this kernel assumes all summands share one Bernstein degree.
    return bern_under, bern_over, bounds, bounds_lower_berns


def _reference(inputs_under, inputs_over, weights, biases):
    n_in = inputs_under.shape[0]
    w_pos = jnp.maximum(weights, 0.0)
    w_neg = jnp.minimum(weights, 0.0)
    over_f = inputs_over.reshape(n_in, -1)
    under_f = inputs_under.reshape(n_in, -1)
    hi = jax.lax.Precision.HIGHEST
    ref_over = (jnp.dot(w_pos, over_f, precision=hi)
                + jnp.dot(w_neg, under_f, precision=hi) + biases[:, None])
    ref_under = (jnp.dot(w_neg, over_f, precision=hi)
                 + jnp.dot(w_pos, under_f, precision=hi) + biases[:, None])
    return ref_under, ref_over


def _check(key, dims, deg, n_in, size, atol):
    k1, k2, k3, k4 = jax.random.split(key, 4)
    coeff_shape = (n_in,) + (deg + 1,) * dims
    inputs_over = jax.random.normal(k1, coeff_shape, dtype=jnp.float32)
    inputs_under = inputs_over - jnp.abs(
        jax.random.normal(k2, coeff_shape, dtype=jnp.float32))
    weights = jax.random.normal(k3, (size, n_in), dtype=jnp.float32)
    biases = jax.random.normal(k4, (size,), dtype=jnp.float32)

    out = layer_module_forward(inputs_under, inputs_over, weights, biases)
    jax.block_until_ready(out)
    bern_under, bern_over, bounds, bounds_lower = out

    ref_under, ref_over = _reference(inputs_under, inputs_over, weights, biases)
    rtol = 1e-4
    assert jnp.allclose(bern_under.reshape(size, -1), ref_under, atol=atol, rtol=rtol)
    assert jnp.allclose(bern_over.reshape(size, -1), ref_over, atol=atol, rtol=rtol)
    assert jnp.allclose(bounds[:, 0], ref_under.min(axis=1), atol=atol, rtol=rtol)
    assert jnp.allclose(bounds[:, 1], ref_over.max(axis=1), atol=atol, rtol=rtol)
    assert jnp.allclose(bounds_lower[:, 0], ref_under.min(axis=1), atol=atol, rtol=rtol)
    assert jnp.allclose(bounds_lower[:, 1], ref_under.max(axis=1), atol=atol, rtol=rtol)


if __name__ == "__main__":
    root = jax.random.PRNGKey(0)
    key1, key2, key3 = jax.random.split(root, 3)
    # Tiny canonical case: 2 vars, degree 4 -> 25 coeffs (padded K, 1 tile), 4 neurons.
    _check(key1, dims=2, deg=4, n_in=4, size=4, atol=1e-4)
    # Mask-free path: (deg+1)^dims = 256 (exact multiple of 128), 2 row tiles.
    _check(key2, dims=2, deg=15, n_in=8, size=32, atol=1e-4)
    # Multi-K-tile case: 13^3 = 2197 coeffs -> 2 K tiles (last tile masked),
    # size=96 -> 2 row tiles of 48.
    _check(key3, dims=3, deg=12, n_in=16, size=96, atol=1e-3)
    print("KERNEL_OK")
</pallas_src>

<mosaic_0001>
module attributes {stable_mosaic.version = 11 : i64} {
  func.func @kernel(%arg0: i32, %arg1: i32, %arg2: memref<8x24xf32, #tpu.memory_space<vmem>>, %arg3: memref<8x24xf32, #tpu.memory_space<vmem>>, %arg4: memref<24x128xf32, #tpu.memory_space<vmem>>, %arg5: memref<8x128xf32, #tpu.memory_space<vmem>>, %arg6: memref<8x128xf32, #tpu.memory_space<vmem>>, %arg7: memref<8x128xf32, #tpu.memory_space<vmem>>, %arg8: memref<8x1xf32, #tpu.memory_space<vmem>>, %arg9: memref<8x1xf32, #tpu.memory_space<vmem>>, %arg10: memref<8x1xf32, #tpu.memory_space<vmem>>) attributes {dimension_semantics = [#tpu.dimension_semantics<parallel>, #tpu.dimension_semantics<arbitrary>], iteration_bounds = array<i64: 1, 1>, scalar_prefetch = 0 : i64, scratch_operands = 3 : i64, tpu.core_type = #tpu.core_type<tc>, window_params = [{transform_indices = @transform_0, window_bounds = array<i64: 8, 24>}, {transform_indices = @transform_1, window_bounds = array<i64: 8, 24>}, {transform_indices = @transform_2, window_bounds = array<i64: 24, 128>}, {transform_indices = @transform_3, window_bounds = array<i64: 8, 128>}, {transform_indices = @transform_4, window_bounds = array<i64: 8, 128>}, {transform_indices = @transform_5, window_bounds = array<i64: 8, 128>}]} {
    %c0_i32 = arith.constant 0 : i32
    %0 = arith.cmpi eq, %arg1, %c0_i32 : i32
    %1 = arith.extui %0 : i1 to i32
    %c0_i32_0 = arith.constant 0 : i32
    %2 = arith.cmpi ne, %1, %c0_i32_0 : i32
    scf.if %2 {
      %cst_17 = arith.constant 0x7F800000 : f32
      %19 = vector.broadcast %cst_17 : f32 to vector<8x1xf32>
      %c0_18 = arith.constant 0 : index
      %c0_19 = arith.constant 0 : index
      %20 = vector.load %arg8[%c0_18, %c0_19] : memref<8x1xf32, #tpu.memory_space<vmem>>, vector<8x1xf32>
      tpu.vector_store %arg8[%c0_18, %c0_19], %19 {strides = array<i32>} : memref<8x1xf32, #tpu.memory_space<vmem>>, vector<8x1xf32>,
      %cst_20 = arith.constant 0xFF800000 : f32
      %21 = vector.broadcast %cst_20 : f32 to vector<8x1xf32>
      %c0_21 = arith.constant 0 : index
      %c0_22 = arith.constant 0 : index
      %22 = vector.load %arg9[%c0_21, %c0_22] : memref<8x1xf32, #tpu.memory_space<vmem>>, vector<8x1xf32>
      tpu.vector_store %arg9[%c0_21, %c0_22], %21 {strides = array<i32>} : memref<8x1xf32, #tpu.memory_space<vmem>>, vector<8x1xf32>,
      %cst_23 = arith.constant 0xFF800000 : f32
      %23 = vector.broadcast %cst_23 : f32 to vector<8x1xf32>
      %c0_24 = arith.constant 0 : index
      %c0_25 = arith.constant 0 : index
      %24 = vector.load %arg10[%c0_24, %c0_25] : memref<8x1xf32, #tpu.memory_space<vmem>>, vector<8x1xf32>
      tpu.vector_store %arg10[%c0_24, %c0_25], %23 {strides = array<i32>} : memref<8x1xf32, #tpu.memory_space<vmem>>, vector<8x1xf32>,
    } else {
    }
    %c0 = arith.constant 0 : index
    %c0_1 = arith.constant 0 : index
    %3 = vector.load %arg4[%c0, %c0_1] : memref<24x128xf32, #tpu.memory_space<vmem>>, vector<24x128xf32>
    %c0_2 = arith.constant 0 : index
    %c0_3 = arith.constant 0 : index
    %4 = vector.load %arg2[%c0_2, %c0_3] : memref<8x24xf32, #tpu.memory_space<vmem>>, vector<8x24xf32>
    %cst = arith.constant dense<0.000000e+00> : vector<8x128xf32>
    %5 = tpu.matmul %4, %3, %cst {dimension_numbers = #tpu.dot_dimension_numbers<[1], [0], [0], [1], [0, 0, 1, 1], [], []>, precision = #tpu.contract_precision<fp32>} : vector<8x24xf32>, vector<24x128xf32>, vector<8x128xf32> -> vector<8x128xf32>
    %c0_4 = arith.constant 0 : index
    %c0_5 = arith.constant 0 : index
    %6 = vector.load %arg3[%c0_4, %c0_5] : memref<8x24xf32, #tpu.memory_space<vmem>>, vector<8x24xf32>
    %cst_6 = arith.constant dense<0.000000e+00> : vector<8x128xf32>
    %7 = tpu.matmul %6, %3, %cst_6 {dimension_numbers = #tpu.dot_dimension_numbers<[1], [0], [0], [1], [0, 0, 1, 1], [], []>, precision = #tpu.contract_precision<fp32>} : vector<8x24xf32>, vector<24x128xf32>, vector<8x128xf32> -> vector<8x128xf32>
    %c0_7 = arith.constant 0 : index
    %c0_8 = arith.constant 0 : index
    %8 = vector.load %arg6[%c0_7, %c0_8] : memref<8x128xf32, #tpu.memory_space<vmem>>, vector<8x128xf32>
    tpu.vector_store %arg6[%c0_7, %c0_8], %5 {strides = array<i32>} : memref<8x128xf32, #tpu.memory_space<vmem>>, vector<8x128xf32>,
    %c0_9 = arith.constant 0 : index
    %c0_10 = arith.constant 0 : index
    %9 = vector.load %arg5[%c0_9, %c0_10] : memref<8x128xf32, #tpu.memory_space<vmem>>, vector<8x128xf32>
    tpu.vector_store %arg5[%c0_9, %c0_10], %7 {strides = array<i32>} : memref<8x128xf32, #tpu.memory_space<vmem>>, vector<8x128xf32>,
    %c0_i32_11 = arith.constant 0 : i32
    %10 = arith.cmpi slt, %arg1, %c0_i32_11 : i32
    %11 = arith.extui %10 : i1 to i32
    %c0_i32_12 = arith.constant 0 : i32
    %12 = arith.cmpi ne, %11, %c0_i32_12 : i32
    scf.if %12 {
      %c0_17 = arith.constant 0 : index
      %c0_18 = arith.constant 0 : index
      %19 = vector.load %arg8[%c0_17, %c0_18] : memref<8x1xf32, #tpu.memory_space<vmem>>, vector<8x1xf32>
      %cst_19 = arith.constant dense<0x7F800000> : vector<8xf32>
      %20 = vector.multi_reduction <minimumf>, %7, %cst_19 [1] : vector<8x128xf32> to vector<8xf32>
      %21 = vector.shape_cast %20 : vector<8xf32> to vector<8x1xf32>
      %22 = arith.minimumf %19, %21 : vector<8x1xf32>
      %c0_20 = arith.constant 0 : index
      %c0_21 = arith.constant 0 : index
      %23 = vector.load %arg8[%c0_20, %c0_21] : memref<8x1xf32, #tpu.memory_space<vmem>>, vector<8x1xf32>
      tpu.vector_store %arg8[%c0_20, %c0_21], %22 {strides = array<i32>} : memref<8x1xf32, #tpu.memory_space<vmem>>, vector<8x1xf32>,
      %c0_22 = arith.constant 0 : index
      %c0_23 = arith.constant 0 : index
      %24 = vector.load %arg9[%c0_22, %c0_23] : memref<8x1xf32, #tpu.memory_space<vmem>>, vector<8x1xf32>
      %cst_24 = arith.constant dense<0xFF800000> : vector<8xf32>
      %25 = vector.multi_reduction <maximumf>, %5, %cst_24 [1] : vector<8x128xf32> to vector<8xf32>
      %26 = vector.shape_cast %25 : vector<8xf32> to vector<8x1xf32>
      %27 = arith.maximumf %24, %26 : vector<8x1xf32>
      %c0_25 = arith.constant 0 : index
      %c0_26 = arith.constant 0 : index
      %28 = vector.load %arg9[%c0_25, %c0_26] : memref<8x1xf32, #tpu.memory_space<vmem>>, vector<8x1xf32>
      tpu.vector_store %arg9[%c0_25, %c0_26], %27 {strides = array<i32>} : memref<8x1xf32, #tpu.memory_space<vmem>>, vector<8x1xf32>,
      %c0_27 = arith.constant 0 : index
      %c0_28 = arith.constant 0 : index
      %29 = vector.load %arg10[%c0_27, %c0_28] : memref<8x1xf32, #tpu.memory_space<vmem>>, vector<8x1xf32>
      %cst_29 = arith.constant dense<0xFF800000> : vector<8xf32>
      %30 = vector.multi_reduction <maximumf>, %7, %cst_29 [1] : vector<8x128xf32> to vector<8xf32>
      %31 = vector.shape_cast %30 : vector<8xf32> to vector<8x1xf32>
      %32 = arith.maximumf %29, %31 : vector<8x1xf32>
      %c0_30 = arith.constant 0 : index
      %c0_31 = arith.constant 0 : index
      %33 = vector.load %arg10[%c0_30, %c0_31] : memref<8x1xf32, #tpu.memory_space<vmem>>, vector<8x1xf32>
      tpu.vector_store %arg10[%c0_30, %c0_31], %32 {strides = array<i32>} : memref<8x1xf32, #tpu.memory_space<vmem>>, vector<8x1xf32>,
    } else {
    }
    %c0_i32_13 = arith.constant 0 : i32
    %13 = arith.cmpi eq, %arg1, %c0_i32_13 : i32
    %14 = arith.extui %13 : i1 to i32
    %c0_i32_14 = arith.constant 0 : i32
    %15 = arith.cmpi ne, %14, %c0_i32_14 : i32
    scf.if %15 {
      %19 = tpu.iota {dimensions = array<i32: 1>} : vector<1x128xi32>
      %c25_i32 = arith.constant 25 : i32
      %20 = vector.broadcast %c25_i32 : i32 to vector<1x128xi32>
      %21 = arith.cmpi slt, %19, %20 : vector<1x128xi32>
      %c0_17 = arith.constant 0 : index
      %c0_18 = arith.constant 0 : index
      %22 = vector.load %arg8[%c0_17, %c0_18] : memref<8x1xf32, #tpu.memory_space<vmem>>, vector<8x1xf32>
      %cst_19 = arith.constant 0x7F800000 : f32
      %23 = vector.shape_cast %21 : vector<1x128xi1> to vector<1x128xi1>
      %24 = vector.broadcast %23 : vector<1x128xi1> to vector<8x128xi1>
      %25 = vector.broadcast %cst_19 : f32 to vector<8x128xf32>
      %26 = arith.select %24, %7, %25 : vector<8x128xi1>, vector<8x128xf32>
      %cst_20 = arith.constant dense<0x7F800000> : vector<8xf32>
      %27 = vector.multi_reduction <minimumf>, %26, %cst_20 [1] : vector<8x128xf32> to vector<8xf32>
      %28 = vector.shape_cast %27 : vector<8xf32> to vector<8x1xf32>
      %29 = arith.minimumf %22, %28 : vector<8x1xf32>
      %c0_21 = arith.constant 0 : index
      %c0_22 = arith.constant 0 : index
      %30 = vector.load %arg8[%c0_21, %c0_22] : memref<8x1xf32, #tpu.memory_space<vmem>>, vector<8x1xf32>
      tpu.vector_store %arg8[%c0_21, %c0_22], %29 {strides = array<i32>} : memref<8x1xf32, #tpu.memory_space<vmem>>, vector<8x1xf32>,
      %c0_23 = arith.constant 0 : index
      %c0_24 = arith.constant 0 : index
      %31 = vector.load %arg9[%c0_23, %c0_24] : memref<8x1xf32, #tpu.memory_space<vmem>>, vector<8x1xf32>
      %cst_25 = arith.constant 0xFF800000 : f32
      %32 = vector.shape_cast %21 : vector<1x128xi1> to vector<1x128xi1>
      %33 = vector.broadcast %32 : vector<1x128xi1> to vector<8x128xi1>
      %34 = vector.broadcast %cst_25 : f32 to vector<8x128xf32>
      %35 = arith.select %33, %5, %34 : vector<8x128xi1>, vector<8x128xf32>
      %cst_26 = arith.constant dense<0xFF800000> : vector<8xf32>
      %36 = vector.multi_reduction <maximumf>, %35, %cst_26 [1] : vector<8x128xf32> to vector<8xf32>
      %37 = vector.shape_cast %36 : vector<8xf32> to vector<8x1xf32>
      %38 = arith.maximumf %31, %37 : vector<8x1xf32>
      %c0_27 = arith.constant 0 : index
      %c0_28 = arith.constant 0 : index
      %39 = vector.load %arg9[%c0_27, %c0_28] : memref<8x1xf32, #tpu.memory_space<vmem>>, vector<8x1xf32>
      tpu.vector_store %arg9[%c0_27, %c0_28], %38 {strides = array<i32>} : memref<8x1xf32, #tpu.memory_space<vmem>>, vector<8x1xf32>,
      %c0_29 = arith.constant 0 : index
      %c0_30 = arith.constant 0 : index
      %40 = vector.load %arg10[%c0_29, %c0_30] : memref<8x1xf32, #tpu.memory_space<vmem>>, vector<8x1xf32>
      %cst_31 = arith.constant 0xFF800000 : f32
      %41 = vector.shape_cast %21 : vector<1x128xi1> to vector<1x128xi1>
      %42 = vector.broadcast %41 : vector<1x128xi1> to vector<8x128xi1>
      %43 = vector.broadcast %cst_31 : f32 to vector<8x128xf32>
      %44 = arith.select %42, %7, %43 : vector<8x128xi1>, vector<8x128xf32>
      %cst_32 = arith.constant dense<0xFF800000> : vector<8xf32>
      %45 = vector.multi_reduction <maximumf>, %44, %cst_32 [1] : vector<8x128xf32> to vector<8xf32>
      %46 = vector.shape_cast %45 : vector<8xf32> to vector<8x1xf32>
      %47 = arith.maximumf %40, %46 : vector<8x1xf32>
      %c0_33 = arith.constant 0 : index
      %c0_34 = arith.constant 0 : index
      %48 = vector.load %arg10[%c0_33, %c0_34] : memref<8x1xf32, #tpu.memory_space<vmem>>, vector<8x1xf32>
      tpu.vector_store %arg10[%c0_33, %c0_34], %47 {strides = array<i32>} : memref<8x1xf32, #tpu.memory_space<vmem>>, vector<8x1xf32>,
    } else {
    }
    %c0_i32_15 = arith.constant 0 : i32
    %16 = arith.cmpi eq, %arg1, %c0_i32_15 : i32
    %17 = arith.extui %16 : i1 to i32
    %c0_i32_16 = arith.constant 0 : i32
    %18 = arith.cmpi ne, %17, %c0_i32_16 : i32
    scf.if %18 {
      %19 = tpu.iota {dimensions = array<i32: 1>} : vector<8x128xi32>
      %c0_i32_17 = arith.constant 0 : i32
      %20 = vector.broadcast %c0_i32_17 : i32 to vector<8x128xi32>
      %21 = arith.cmpi eq, %19, %20 : vector<8x128xi32>
      %c0_18 = arith.constant 0 : index
      %c0_19 = arith.constant 0 : index
      %22 = vector.load %arg8[%c0_18, %c0_19] : memref<8x1xf32, #tpu.memory_space<vmem>>, vector<8x1xf32>
      %cst_20 = arith.constant 0.000000e+00 : f32
      %23 = vector.shape_cast %22 : vector<8x1xf32> to vector<8x1xf32>
      %24 = vector.broadcast %23 : vector<8x1xf32> to vector<8x128xf32>
      %25 = vector.broadcast %cst_20 : f32 to vector<8x128xf32>
      %26 = arith.select %21, %24, %25 : vector<8x128xi1>, vector<8x128xf32>
      %c1_i32 = arith.constant 1 : i32
      %27 = vector.broadcast %c1_i32 : i32 to vector<8x128xi32>
      %28 = arith.cmpi eq, %19, %27 : vector<8x128xi32>
      %c0_21 = arith.constant 0 : index
      %c0_22 = arith.constant 0 : index
      %29 = vector.load %arg9[%c0_21, %c0_22] : memref<8x1xf32, #tpu.memory_space<vmem>>, vector<8x1xf32>
      %30 = vector.shape_cast %29 : vector<8x1xf32> to vector<8x1xf32>
      %31 = vector.broadcast %30 : vector<8x1xf32> to vector<8x128xf32>
      %32 = arith.select %28, %31, %26 : vector<8x128xi1>, vector<8x128xf32>
      %c2_i32 = arith.constant 2 : i32
      %33 = vector.broadcast %c2_i32 : i32 to vector<8x128xi32>
      %34 = arith.cmpi eq, %19, %33 : vector<8x128xi32>
      %c0_23 = arith.constant 0 : index
      %c0_24 = arith.constant 0 : index
      %35 = vector.load %arg10[%c0_23, %c0_24] : memref<8x1xf32, #tpu.memory_space<vmem>>, vector<8x1xf32>
      %36 = vector.shape_cast %35 : vector<8x1xf32> to vector<8x1xf32>
      %37 = vector.broadcast %36 : vector<8x1xf32> to vector<8x128xf32>
      %38 = arith.select %34, %37, %32 : vector<8x128xi1>, vector<8x128xf32>
      %c0_25 = arith.constant 0 : index
      %c0_26 = arith.constant 0 : index
      %39 = vector.load %arg7[%c0_25, %c0_26] : memref<8x128xf32, #tpu.memory_space<vmem>>, vector<8x128xf32>
      tpu.vector_store %arg7[%c0_25, %c0_26], %38 {strides = array<i32>} : memref<8x128xf32, #tpu.memory_space<vmem>>, vector<8x128xf32>,
    } else {
    }
    return
  }
  func.func @transform_0(%arg0: i32, %arg1: i32) -> (i32, i32) {
    %c0_i32 = arith.constant 0 : i32
    %c0_i32_0 = arith.constant 0 : i32
    return %arg0, %c0_i32 : i32, i32
  }
  func.func @transform_1(%arg0: i32, %arg1: i32) -> (i32, i32) {
    %c0_i32 = arith.constant 0 : i32
    %c0_i32_0 = arith.constant 0 : i32
    return %arg0, %c0_i32 : i32, i32
  }
  func.func @transform_2(%arg0: i32, %arg1: i32) -> (i32, i32) {
    %c0_i32 = arith.constant 0 : i32
    %c0_i32_0 = arith.constant 0 : i32
    return %c0_i32, %arg1 : i32, i32
  }
  func.func @transform_3(%arg0: i32, %arg1: i32) -> (i32, i32) {
    %c0_i32 = arith.constant 0 : i32
    return %arg0, %arg1 : i32, i32
  }
  func.func @transform_4(%arg0: i32, %arg1: i32) -> (i32, i32) {
    %c0_i32 = arith.constant 0 : i32
    return %arg0, %arg1 : i32, i32
  }
  func.func @transform_5(%arg0: i32, %arg1: i32) -> (i32, i32) {
    %c0_i32 = arith.constant 0 : i32
    %c0_i32_0 = arith.constant 0 : i32
    return %arg0, %c0_i32 : i32, i32
  }
}

</mosaic_0001>

<llo_original>
// kernel: layer_module_forward.1
$region0: #{layer_module_forward.1}
  #allocation0 [shape = 'u32[]', space=smem, size = 0x4, offset = 0x4, fixed_abs, tag = 'smem constant byte address 0x4 - core index']
  #allocation1 [shape = 'u32[144,128]{1,0:T(1,128)}', space=vmem, size = 0x12000, scoped, tag = 'internal scratch']
  #allocation2 [shape = 'f32[8,1]{1,0:T(8,128)}', space=vmem, size = 0x1000, scoped, tag = 'scratch operand']
  #allocation3 [shape = 'f32[8,1]{1,0:T(8,128)}', space=vmem, size = 0x1000, scoped, tag = 'scratch operand']
  #allocation4 [shape = 'f32[8,1]{1,0:T(8,128)}', space=vmem, size = 0x1000, scoped, tag = 'scratch operand']
  %s0 = inlined_call_operand.vmem [shape: f32[8,24], index: 0, kind: input, shape index: {}]
  %s1 = inlined_call_operand.vmem [shape: f32[8,24], index: 1, kind: input, shape index: {}]
  %s2 = inlined_call_operand.vmem [shape: f32[24,128], index: 2, kind: input, shape index: {}]
  %s3 = inlined_call_operand.vmem [shape: f32[8,128], index: 3, kind: output, shape index: {0}]
  %s4 = inlined_call_operand.vmem [shape: f32[8,128], index: 4, kind: output, shape index: {1}]
  %s5 = inlined_call_operand.vmem [shape: f32[8,128], index: 5, kind: output, shape index: {2}]
  %6 = xla_tuple %s3, %s4, %s5
  %s7 = sld [smem:[#allocation0]]
  $region50: #{layer_module_forward.1} parent=0
    _
  %s9 = ssub.s32 1, %s7
  %s10 = scalar_select 0, %s9, %s7
  // Predicated region
  $region2: #{layer_module_forward.1} parent=0 // pred_check
    _
  $region3: #{layer_module_forward.1} parent=0 // pred_check_branch
    %12 = sbr.rel (0) target = $region5
  $region4: #{layer_module_forward.1} parent=0 // pred_region
    _
  $region5: #{layer_module_forward.1} parent=0 // pred_fallthru
    _
  // Predicated region
  $region6: #{layer_module_forward.1} parent=0 // pred_check
    _
  $region7: #{layer_module_forward.1} parent=0 // pred_check_branch
    %14 = sbr.rel (0) target = $region9
  $region8: #{layer_module_forward.1} parent=0 // pred_region
    _
  $region9: #{layer_module_forward.1} parent=0 // pred_fallthru
    _
  // Predicated region
  $region10: #{layer_module_forward.1} parent=0 // pred_check
    _
  $region11: #{layer_module_forward.1} parent=0 // pred_check_branch
    %16 = sbr.rel (0) target = $region13
  $region12: #{layer_module_forward.1} parent=0 // pred_region
    _
  $region13: #{layer_module_forward.1} parent=0 // pred_fallthru
    _
  %p17 = scmp.eq.s32.totalorder 0, 0
  // Predicated region
  $region14: #{layer_module_forward.1} parent=0 // pred_check
    %p18 = pneg %p17
  $region15: #{layer_module_forward.1} parent=0 // pred_check_branch
    %20 = sbr.rel (%p18) target = $region17
  $region16: #{layer_module_forward.1} parent=0 // pred_region
    %vm21 = vcmask 7168
    %22 = vst.msk [vmem:[#allocation2] sm:$0xff] %vm21, inf
    %23 = vst.msk [vmem:[#allocation3] sm:$0xff] %vm21, -inf
    %24 = vst.msk [vmem:[#allocation4] sm:$0xff] %vm21, -inf
  $region17: #{layer_module_forward.1} parent=0 // pred_fallthru
    _
  %v25 = vld [vmem:[%s2] sm:$0xff]
  %v26 = vld [vmem:[%s2 + $0x8] sm:$0xff]
  %v27 = vld [vmem:[%s2 + $0x10] sm:$0xff]
  %v28 = vld [vmem:[%s0] sm:$0xff]
  %vm29 = vcmask 195584
  %v31 = vsel %vm29, %v28, 0
  %33 = vmatprep.subr.mxu0 0.0
  %v34 = vand.u32 %v25, 4294901760
  %35 = vmatpush1.msra.mxu0 %v34
  %36 = vmatprep.subr.mxu0 0.0
  %v37 = vand.u32 %v26, 4294901760
  %38 = vmatpush1.msra.mxu0 %v37
  %39 = vmatprep.subr.mxu0 0.0
  %v40 = vand.u32 %v27, 4294901760
  %41 = vmatpush1.msra.mxu0 %v40
  %42 = vmatprep.subr.mxu0 0.0
  %43 = vmatpush1.msra.mxu0 0.0
  %44 = vmatprep.subr.mxu0 0.0
  %45 = vmatpush1.msra.mxu0 0.0
  %46 = vmatprep.subr.mxu0 0.0
  %47 = vmatpush1.msra.mxu0 0.0
  %48 = vmatprep.subr.mxu0 0.0
  %49 = vmatpush1.msra.mxu0 0.0
  %50 = vmatprep.subr.mxu0 0.0
  %51 = vmatpush1.msra.mxu0 0.0
  %52 = vmatprep.subr.mxu0 0.0
  %53 = vmatpush1.msra.mxu0 0.0
  %54 = vmatprep.subr.mxu0 0.0
  %55 = vmatpush1.msra.mxu0 0.0
  %56 = vmatprep.subr.mxu0 0.0
  %57 = vmatpush1.msra.mxu0 0.0
  %58 = vmatprep.subr.mxu0 0.0
  %59 = vmatpush1.msra.mxu0 0.0
  %60 = vmatprep.subr.mxu0 0.0
  %61 = vmatpush1.msra.mxu0 0.0
  %62 = vmatprep.subr.mxu0 0.0
  %63 = vmatpush1.msra.mxu0 0.0
  %64 = vmatprep.subr.mxu0 0.0
  %65 = vmatpush1.msra.mxu0 0.0
  %66 = vmatprep.subr.mxu0 0.0
  %67 = vmatpush1.msra.mxu0 0.0
  %68 = vmatprep.subr.mxu0 0.0
  %69 = vmatpush1.msra.mxu0 0.0
  %70 = vmatprep.subr.mxu0 0.0
  %71 = vmatpush1.msra.mxu0 0.0
  %72 = vmatprep.subr.mxu0 0.0
  %73 = vmatpush1.msra.mxu0 0.0
  %74 = vmatprep.subr.mxu0 0.0
  %75 = vmatpush1.msra.mxu0 0.0
  %76 = vmatprep.subr.mxu0 0.0
  %77 = vmatpush1.msra.mxu0 0.0
  %78 = vmatprep.subr.mxu0 0.0
  %79 = vmatpush1.msra.mxu0 0.0
  %80 = vmatprep.subr.mxu0 0.0
  %81 = vmatpush1.msra.mxu0 0.0
  %82 = vmatprep.subr.mxu0 0.0
  %83 = vmatpush1.msra.mxu0 0.0
  %84 = vmatprep.subr.mxu0 0.0
  %85 = vmatpush1.msra.mxu0 0.0
  %86 = vmatprep.subr.mxu0 0.0
  %87 = vmatpush1.msra.mxu0 0.0
  %88 = vmatprep.subr.mxu0 0.0
  %89 = vmatpush1.msra.mxu0 0.0
  %90 = vmatprep.subr.mxu0 0.0
  %91 = vmatpush1.msra.mxu0 0.0
  %92 = vmatprep.subr.mxu0 0.0
  %93 = vmatpush1.msra.mxu0 0.0
  %94 = vmatprep.subr.mxu0 0.0
  %95 = vmatpush1.msra.mxu0 0.0
  %96 = vmatprep.subr.mxu0 0.0
  %97 = vmatpush1.msra.mxu0 0.0
  %98 = vmatprep.subr.mxu0 0.0
  %99 = vmatpush1.msra.mxu0 0.0
  %100 = vmatprep.mubr.f32.mxu0 0.0
  %v101 = vand.u32 %v31, 4294901760
  %v102 = vsub.f32 %v31, %v101
  %v103 = vand.u32 %v102, 4294901760
  %v104 = vsub.f32 %v102, %v103
  %v105 = vand.u32 %v104, 4294901760
  %106 = vmatmul.mubr.f32.gmra.mrb[0].mxu0 %v105
  %v107 = vpop.f32.mrb[0].mxu0
  %v108 = vadd.f32 0.0, %v107
  %v109 = vpop.f32.mrb[0].mxu0
  %110 = vdwg.mxu0
  %111 = vmatprep.subr.mxu0 0.0
  %v112 = vand.u32 %v25, 4294901760
  %v113 = vsub.f32 %v25, %v112
  %v114 = vand.u32 %v113, 4294901760
  %v115 = vsub.f32 %v113, %v114
  %v116 = vand.u32 %v115, 4294901760
  %117 = vmatpush1.msra.mxu0 %v116
  %118 = vmatprep.subr.mxu0 0.0
  %v119 = vand.u32 %v26, 4294901760
  %v120 = vsub.f32 %v26, %v119
  %v121 = vand.u32 %v120, 4294901760
  %v122 = vsub.f32 %v120, %v121
  %v123 = vand.u32 %v122, 4294901760
  %124 = vmatpush1.msra.mxu0 %v123
  %125 = vmatprep.subr.mxu0 0.0
  %v126 = vand.u32 %v27, 4294901760
  %v127 = vsub.f32 %v27, %v126
  %v128 = vand.u32 %v127, 4294901760
  %v129 = vsub.f32 %v127, %v128
  %v130 = vand.u32 %v129, 4294901760
  %131 = vmatpush1.msra.mxu0 %v130
  %132 = vmatprep.subr.mxu0 0.0
  %133 = vmatpush1.msra.mxu0 0.0
  %134 = vmatprep.subr.mxu0 0.0
  %135 = vmatpush1.msra.mxu0 0.0
  %136 = vmatprep.subr.mxu0 0.0
  %137 = vmatpush1.msra.mxu0 0.0
  %138 = vmatprep.subr.mxu0 0.0
  %139 = vmatpush1.msra.mxu0 0.0
  %140 = vmatprep.subr.mxu0 0.0
  %141 = vmatpush1.msra.mxu0 0.0
  %142 = vmatprep.subr.mxu0 0.0
  %143 = vmatpush1.msra.mxu0 0.0
  %144 = vmatprep.subr.mxu0 0.0
  %145 = vmatpush1.msra.mxu0 0.0
  %146 = vmatprep.subr.mxu0 0.0
  %147 = vmatpush1.msra.mxu0 0.0
  %148 = vmatprep.subr.mxu0 0.0
  %149 = vmatpush1.msra.mxu0 0.0
  %150 = vmatprep.subr.mxu0 0.0
  %151 = vmatpush1.msra.mxu0 0.0
  %152 = vmatprep.subr.mxu0 0.0
  %153 = vmatpush1.msra.mxu0 0.0
  %154 = vmatprep.subr.mxu0 0.0
  %155 = vmatpush1.msra.mxu0 0.0
  %156 = vmatprep.subr.mxu0 0.0
  %157 = vmatpush1.msra.mxu0 0.0
  %158 = vmatprep.subr.mxu0 0.0
  %159 = vmatpush1.msra.mxu0 0.0
  %160 = vmatprep.subr.mxu0 0.0
  %161 = vmatpush1.msra.mxu0 0.0
  %162 = vmatprep.subr.mxu0 0.0
  %163 = vmatpush1.msra.mxu0 0.0
  %164 = vmatprep.subr.mxu0 0.0
  %165 = vmatpush1.msra.mxu0 0.0
  %166 = vmatprep.subr.mxu0 0.0
  %167 = vmatpush1.msra.mxu0 0.0
  %168 = vmatprep.subr.mxu0 0.0
  %169 = vmatpush1.msra.mxu0 0.0
  %170 = vmatprep.subr.mxu0 0.0
  %171 = vmatpush1.msra.mxu0 0.0
  %172 = vmatprep.subr.mxu0 0.0
  %173 = vmatpush1.msra.mxu0 0.0
  %174 = vmatprep.subr.mxu0 0.0
  %175 = vmatpush1.msra.mxu0 0.0
  %176 = vmatprep.subr.mxu0 0.0
  %177 = vmatpush1.msra.mxu0 0.0
  %178 = vmatprep.subr.mxu0 0.0
  %179 = vmatpush1.msra.mxu0 0.0
  %180 = vmatprep.subr.mxu0 0.0
  %181 = vmatpush1.msra.mxu0 0.0
  %182 = vmatprep.subr.mxu0 0.0
  %183 = vmatpush1.msra.mxu0 0.0
  %184 = vmatprep.subr.mxu0 0.0
  %185 = vmatpush1.msra.mxu0 0.0
  %186 = vmatprep.subr.mxu0 0.0
  %187 = vmatpush1.msra.mxu0 0.0
  %188 = vmatprep.subr.mxu0 0.0
  %189 = vmatpush1.msra.mxu0 0.0
  %190 = vmatprep.mubr.f32.mxu0 0.0
  %v191 = vand.u32 %v31, 4294901760
  %192 = vmatmul.mubr.f32.gmra.mrb[0].mxu0 %v191
  %v193 = vpop.f32.mrb[0].mxu0
  %v194 = vadd.f32 %v108, %v193
  %v195 = vpop.f32.mrb[0].mxu0
  %196 = vdwg.mxu0
  %197 = vmatprep.subr.mxu0 0.0
  %v198 = vand.u32 %v25, 4294901760
  %v199 = vsub.f32 %v25, %v198
  %200 = vmatpush1.msra.mxu0 %v199
  %201 = vmatprep.subr.mxu0 0.0
  %v202 = vand.u32 %v26, 4294901760
  %v203 = vsub.f32 %v26, %v202
  %204 = vmatpush1.msra.mxu0 %v203
  %205 = vmatprep.subr.mxu0 0.0
  %v206 = vand.u32 %v27, 4294901760
  %v207 = vsub.f32 %v27, %v206
  %208 = vmatpush1.msra.mxu0 %v207
  %209 = vmatprep.subr.mxu0 0.0
  %210 = vmatpush1.msra.mxu0 0.0
  %211 = vmatprep.subr.mxu0 0.0
  %212 = vmatpush1.msra.mxu0 0.0
  %213 = vmatprep.subr.mxu0 0.0
  %214 = vmatpush1.msra.mxu0 0.0
  %215 = vmatprep.subr.mxu0 0.0
  %216 = vmatpush1.msra.mxu0 0.0
  %217 = vmatprep.subr.mxu0 0.0
  %218 = vmatpush1.msra.mxu0 0.0
  %219 = vmatprep.subr.mxu0 0.0
  %220 = vmatpush1.msra.mxu0 0.0
  %221 = vmatprep.subr.mxu0 0.0
  %222 = vmatpush1.msra.mxu0 0.0
  %223 = vmatprep.subr.mxu0 0.0
  %224 = vmatpush1.msra.mxu0 0.0
  %225 = vmatprep.subr.mxu0 0.0
  %226 = vmatpush1.msra.mxu0 0.0
  %227 = vmatprep.subr.mxu0 0.0
  %228 = vmatpush1.msra.mxu0 0.0
  %229 = vmatprep.subr.mxu0 0.0
  %230 = vmatpush1.msra.mxu0 0.0
  %231 = vmatprep.subr.mxu0 0.0
  %232 = vmatpush1.msra.mxu0 0.0
  %233 = vmatprep.subr.mxu0 0.0
  %234 = vmatpush1.msra.mxu0 0.0
  %235 = vmatprep.subr.mxu0 0.0
  %236 = vmatpush1.msra.mxu0 0.0
  %237 = vmatprep.subr.mxu0 0.0
  %238 = vmatpush1.msra.mxu0 0.0
  %239 = vmatprep.subr.mxu0 0.0
  %240 = vmatpush1.msra.mxu0 0.0
  %241 = vmatprep.subr.mxu0 0.0
  %242 = vmatpush1.msra.mxu0 0.0
  %243 = vmatprep.subr.mxu0 0.0
  %244 = vmatpush1.msra.mxu0 0.0
  %245 = vmatprep.subr.mxu0 0.0
  %246 = vmatpush1.msra.mxu0 0.0
  %247 = vmatprep.subr.mxu0 0.0
  %248 = vmatpush1.msra.mxu0 0.0
  %249 = vmatprep.subr.mxu0 0.0
  %250 = vmatpush1.msra.mxu0 0.0
  %251 = vmatprep.subr.mxu0 0.0
  %252 = vmatpush1.msra.mxu0 0.0
  %253 = vmatprep.subr.mxu0 0.0
  %254 = vmatpush1.msra.mxu0 0.0
  %255 = vmatprep.subr.mxu0 0.0
  %256 = vmatpush1.msra.mxu0 0.0
  %257 = vmatprep.subr.mxu0 0.0
  %258 = vmatpush1.msra.mxu0 0.0
  %259 = vmatprep.subr.mxu0 0.0
  %260 = vmatpush1.msra.mxu0 0.0
  %261 = vmatprep.subr.mxu0 0.0
  %262 = vmatpush1.msra.mxu0 0.0
  %263 = vmatprep.subr.mxu0 0.0
  %264 = vmatpush1.msra.mxu0 0.0
  %265 = vmatprep.subr.mxu0 0.0
  %266 = vmatpush1.msra.mxu0 0.0
  %267 = vmatprep.mubr.f32.mxu0 0.0
  %v268 = vand.u32 %v31, 4294901760
  %v269 = vsub.f32 %v31, %v268
  %270 = vmatmul.mubr.f32.gmra.mrb[0].mxu0 %v269
  %v271 = vpop.f32.mrb[0].mxu0
  %v272 = vadd.f32 %v194, %v271
  %v273 = vpop.f32.mrb[0].mxu0
  %274 = vdwg.mxu0
  %275 = vmatprep.subr.mxu0 0.0
  %v276 = vand.u32 %v25, 4294901760
  %277 = vmatpush1.msra.mxu0 %v276
  %278 = vmatprep.subr.mxu0 0.0
  %v279 = vand.u32 %v26, 4294901760
  %280 = vmatpush1.msra.mxu0 %v279
  %281 = vmatprep.subr.mxu0 0.0
  %v282 = vand.u32 %v27, 4294901760
  %283 = vmatpush1.msra.mxu0 %v282
  %284 = vmatprep.subr.mxu0 0.0
  %285 = vmatpush1.msra.mxu0 0.0
  %286 = vmatprep.subr.mxu0 0.0
  %287 = vmatpush1.msra.mxu0 0.0
  %288 = vmatprep.subr.mxu0 0.0
  %289 = vmatpush1.msra.mxu0 0.0
  %290 = vmatprep.subr.mxu0 0.0
  %291 = vmatpush1.msra.mxu0 0.0
  %292 = vmatprep.subr.mxu0 0.0
  %293 = vmatpush1.msra.mxu0 0.0
  %294 = vmatprep.subr.mxu0 0.0
  %295 = vmatpush1.msra.mxu0 0.0
  %296 = vmatprep.subr.mxu0 0.0
  %297 = vmatpush1.msra.mxu0 0.0
  %298 = vmatprep.subr.mxu0 0.0
  %299 = vmatpush1.msra.mxu0 0.0
  %300 = vmatprep.subr.mxu0 0.0
  %301 = vmatpush1.msra.mxu0 0.0
  %302 = vmatprep.subr.mxu0 0.0
  %303 = vmatpush1.msra.mxu0 0.0
  %304 = vmatprep.subr.mxu0 0.0
  %305 = vmatpush1.msra.mxu0 0.0
  %306 = vmatprep.subr.mxu0 0.0
  %307 = vmatpush1.msra.mxu0 0.0
  %308 = vmatprep.subr.mxu0 0.0
  %309 = vmatpush1.msra.mxu0 0.0
  %310 = vmatprep.subr.mxu0 0.0
  %311 = vmatpush1.msra.mxu0 0.0
  %312 = vmatprep.subr.mxu0 0.0
  %313 = vmatpush1.msra.mxu0 0.0
  %314 = vmatprep.subr.mxu0 0.0
  %315 = vmatpush1.msra.mxu0 0.0
  %316 = vmatprep.subr.mxu0 0.0
  %317 = vmatpush1.msra.mxu0 0.0
  %318 = vmatprep.subr.mxu0 0.0
  %319 = vmatpush1.msra.mxu0 0.0
  %320 = vmatprep.subr.mxu0 0.0
  %321 = vmatpush1.msra.mxu0 0.0
  %322 = vmatprep.subr.mxu0 0.0
  %323 = vmatpush1.msra.mxu0 0.0
  %324 = vmatprep.subr.mxu0 0.0
  %325 = vmatpush1.msra.mxu0 0.0
  %326 = vmatprep.subr.mxu0 0.0
  %327 = vmatpush1.msra.mxu0 0.0
  %328 = vmatprep.subr.mxu0 0.0
  %329 = vmatpush1.msra.mxu0 0.0
  %330 = vmatprep.subr.mxu0 0.0
  %331 = vmatpush1.msra.mxu0 0.0
  %332 = vmatprep.subr.mxu0 0.0
  %333 = vmatpush1.msra.mxu0 0.0
  %334 = vmatprep.subr.mxu0 0.0
  %335 = vmatpush1.msra.mxu0 0.0
  %336 = vmatprep.subr.mxu0 0.0
  %337 = vmatpush1.msra.mxu0 0.0
  %338 = vmatprep.subr.mxu0 0.0
  %339 = vmatpush1.msra.mxu0 0.0
  %340 = vmatprep.subr.mxu0 0.0
  %341 = vmatpush1.msra.mxu0 0.0
  %342 = vmatprep.mubr.f32.mxu0 0.0
  %v343 = vand.u32 %v31, 4294901760
  %v344 = vsub.f32 %v31, %v343
  %v345 = vand.u32 %v344, 4294901760
  %346 = vmatmul.mubr.f32.gmra.mrb[0].mxu0 %v345
  %v347 = vpop.f32.mrb[0].mxu0
  %v348 = vadd.f32 %v272, %v347
  %v349 = vpop.f32.mrb[0].mxu0
  %350 = vdwg.mxu0
  %351 = vmatprep.subr.mxu0 0.0
  %v352 = vand.u32 %v25, 4294901760
  %v353 = vsub.f32 %v25, %v352
  %v354 = vand.u32 %v353, 4294901760
  %355 = vmatpush1.msra.mxu0 %v354
  %356 = vmatprep.subr.mxu0 0.0
  %v357 = vand.u32 %v26, 4294901760
  %v358 = vsub.f32 %v26, %v357
  %v359 = vand.u32 %v358, 4294901760
  %360 = vmatpush1.msra.mxu0 %v359
  %361 = vmatprep.subr.mxu0 0.0
  %v362 = vand.u32 %v27, 4294901760
  %v363 = vsub.f32 %v27, %v362
  %v364 = vand.u32 %v363, 4294901760
  %365 = vmatpush1.msra.mxu0 %v364
  %366 = vmatprep.subr.mxu0 0.0
  %367 = vmatpush1.msra.mxu0 0.0
  %368 = vmatprep.subr.mxu0 0.0
  %369 = vmatpush1.msra.mxu0 0.0
  %370 = vmatprep.subr.mxu0 0.0
  %371 = vmatpush1.msra.mxu0 0.0
  %372 = vmatprep.subr.mxu0 0.0
  %373 = vmatpush1.msra.mxu0 0.0
  %374 = vmatprep.subr.mxu0 0.0
  %375 = vmatpush1.msra.mxu0 0.0
  %376 = vmatprep.subr.mxu0 0.0
  %377 = vmatpush1.msra.mxu0 0.0
  %378 = vmatprep.subr.mxu0 0.0
  %379 = vmatpush1.msra.mxu0 0.0
  %380 = vmatprep.subr.mxu0 0.0
  %381 = vmatpush1.msra.mxu0 0.0
  %382 = vmatprep.subr.mxu0 0.0
  %383 = vmatpush1.msra.mxu0 0.0
  %384 = vmatprep.subr.mxu0 0.0
  %385 = vmatpush1.msra.mxu0 0.0
  %386 = vmatprep.subr.mxu0 0.0
  %387 = vmatpush1.msra.mxu0 0.0
  %388 = vmatprep.subr.mxu0 0.0
  %389 = vmatpush1.msra.mxu0 0.0
  %390 = vmatprep.subr.mxu0 0.0
  %391 = vmatpush1.msra.mxu0 0.0
  %392 = vmatprep.subr.mxu0 0.0
  %393 = vmatpush1.msra.mxu0 0.0
  %394 = vmatprep.subr.mxu0 0.0
  %395 = vmatpush1.msra.mxu0 0.0
  %396 = vmatprep.subr.mxu0 0.0
  %397 = vmatpush1.msra.mxu0 0.0
  %398 = vmatprep.subr.mxu0 0.0
  %399 = vmatpush1.msra.mxu0 0.0
  %400 = vmatprep.subr.mxu0 0.0
  %401 = vmatpush1.msra.mxu0 0.0
  %402 = vmatprep.subr.mxu0 0.0
  %403 = vmatpush1.msra.mxu0 0.0
  %404 = vmatprep.subr.mxu0 0.0
  %405 = vmatpush1.msra.mxu0 0.0
  %406 = vmatprep.subr.mxu0 0.0
  %407 = vmatpush1.msra.mxu0 0.0
  %408 = vmatprep.subr.mxu0 0.0
  %409 = vmatpush1.msra.mxu0 0.0
  %410 = vmatprep.subr.mxu0 0.0
  %411 = vmatpush1.msra.mxu0 0.0
  %412 = vmatprep.subr.mxu0 0.0
  %413 = vmatpush1.msra.mxu0 0.0
  %414 = vmatprep.subr.mxu0 0.0
  %415 = vmatpush1.msra.mxu0 0.0
  %416 = vmatprep.subr.mxu0 0.0
  %417 = vmatpush1.msra.mxu0 0.0
  %418 = vmatprep.subr.mxu0 0.0
  %419 = vmatpush1.msra.mxu0 0.0
  %420 = vmatprep.subr.mxu0 0.0
  %421 = vmatpush1.msra.mxu0 0.0
  %422 = vmatprep.subr.mxu0 0.0
  %423 = vmatpush1.msra.mxu0 0.0
  %424 = vmatprep.mubr.f32.mxu0 0.0
  %v425 = vand.u32 %v31, 4294901760
  %426 = vmatmul.mubr.f32.gmra.mrb[0].mxu0 %v425
  %v427 = vpop.f32.mrb[0].mxu0
  %v428 = vadd.f32 %v348, %v427
  %v429 = vpop.f32.mrb[0].mxu0
  %430 = vdwg.mxu0
  %431 = vmatprep.subr.mxu0 0.0
  %v432 = vand.u32 %v25, 4294901760
  %433 = vmatpush1.msra.mxu0 %v432
  %434 = vmatprep.subr.mxu0 0.0
  %v435 = vand.u32 %v26, 4294901760
  %436 = vmatpush1.msra.mxu0 %v435
  %437 = vmatprep.subr.mxu0 0.0
  %v438 = vand.u32 %v27, 4294901760
  %439 = vmatpush1.msra.mxu0 %v438
  %440 = vmatprep.subr.mxu0 0.0
  %441 = vmatpush1.msra.mxu0 0.0
  %442 = vmatprep.subr.mxu0 0.0
  %443 = vmatpush1.msra.mxu0 0.0
  %444 = vmatprep.subr.mxu0 0.0
  %445 = vmatpush1.msra.mxu0 0.0
  %446 = vmatprep.subr.mxu0 0.0
  %447 = vmatpush1.msra.mxu0 0.0
  %448 = vmatprep.subr.mxu0 0.0
  %449 = vmatpush1.msra.mxu0 0.0
  %450 = vmatprep.subr.mxu0 0.0
  %451 = vmatpush1.msra.mxu0 0.0
  %452 = vmatprep.subr.mxu0 0.0
  %453 = vmatpush1.msra.mxu0 0.0
  %454 = vmatprep.subr.mxu0 0.0
  %455 = vmatpush1.msra.mxu0 0.0
  %456 = vmatprep.subr.mxu0 0.0
  %457 = vmatpush1.msra.mxu0 0.0
  %458 = vmatprep.subr.mxu0 0.0
  %459 = vmatpush1.msra.mxu0 0.0
  %460 = vmatprep.subr.mxu0 0.0
  %461 = vmatpush1.msra.mxu0 0.0
  %462 = vmatprep.subr.mxu0 0.0
  %463 = vmatpush1.msra.mxu0 0.0
  %464 = vmatprep.subr.mxu0 0.0
  %465 = vmatpush1.msra.mxu0 0.0
  %466 = vmatprep.subr.mxu0 0.0
  %467 = vmatpush1.msra.mxu0 0.0
  %468 = vmatprep.subr.mxu0 0.0
  %469 = vmatpush1.msra.mxu0 0.0
  %470 = vmatprep.subr.mxu0 0.0
  %471 = vmatpush1.msra.mxu0 0.0
  %472 = vmatprep.subr.mxu0 0.0
  %473 = vmatpush1.msra.mxu0 0.0
  %474 = vmatprep.subr.mxu0 0.0
  %475 = vmatpush1.msra.mxu0 0.0
  %476 = vmatprep.subr.mxu0 0.0
  %477 = vmatpush1.msra.mxu0 0.0
  %478 = vmatprep.subr.mxu0 0.0
  %479 = vmatpush1.msra.mxu0 0.0
  %480 = vmatprep.subr.mxu0 0.0
  %481 = vmatpush1.msra.mxu0 0.0
  %482 = vmatprep.subr.mxu0 0.0
  %483 = vmatpush1.msra.mxu0 0.0
  %484 = vmatprep.subr.mxu0 0.0
  %485 = vmatpush1.msra.mxu0 0.0
  %486 = vmatprep.subr.mxu0 0.0
  %487 = vmatpush1.msra.mxu0 0.0
  %488 = vmatprep.subr.mxu0 0.0
  %489 = vmatpush1.msra.mxu0 0.0
  %490 = vmatprep.subr.mxu0 0.0
  %491 = vmatpush1.msra.mxu0 0.0
  %492 = vmatprep.subr.mxu0 0.0
  %493 = vmatpush1.msra.mxu0 0.0
  %494 = vmatprep.subr.mxu0 0.0
  %495 = vmatpush1.msra.mxu0 0.0
  %496 = vmatprep.subr.mxu0 0.0
  %497 = vmatpush1.msra.mxu0 0.0
  %498 = vmatprep.mubr.f32.mxu0 0.0
  %v499 = vand.u32 %v31, 4294901760
  %500 = vmatmul.mubr.f32.gmra.mrb[0].mxu0 %v499
  %v501 = vpop.f32.mrb[0].mxu0
  %v502 = vadd.f32 %v428, %v501
  %v503 = vpop.f32.mrb[0].mxu0
  %504 = vdwg.mxu0
  %v505 = vld [vmem:[%s1] sm:$0xff]
  %v507 = vsel %vm29, %v505, 0
  %509 = vmatprep.subr.mxu0 0.0
  %v510 = vand.u32 %v25, 4294901760
  %511 = vmatpush1.msra.mxu0 %v510
  %512 = vmatprep.subr.mxu0 0.0
  %v513 = vand.u32 %v26, 4294901760
  %514 = vmatpush1.msra.mxu0 %v513
  %515 = vmatprep.subr.mxu0 0.0
  %v516 = vand.u32 %v27, 4294901760
  %517 = vmatpush1.msra.mxu0 %v516
  %518 = vmatprep.subr.mxu0 0.0
  %519 = vmatpush1.msra.mxu0 0.0
  %520 = vmatprep.subr.mxu0 0.0
  %521 = vmatpush1.msra.mxu0 0.0
  %522 = vmatprep.subr.mxu0 0.0
  %523 = vmatpush1.msra.mxu0 0.0
  %524 = vmatprep.subr.mxu0 0.0
  %525 = vmatpush1.msra.mxu0 0.0
  %526 = vmatprep.subr.mxu0 0.0
  %527 = vmatpush1.msra.mxu0 0.0
  %528 = vmatprep.subr.mxu0 0.0
  %529 = vmatpush1.msra.mxu0 0.0
  %530 = vmatprep.subr.mxu0 0.0
  %531 = vmatpush1.msra.mxu0 0.0
  %532 = vmatprep.subr.mxu0 0.0
  %533 = vmatpush1.msra.mxu0 0.0
  %534 = vmatprep.subr.mxu0 0.0
  %535 = vmatpush1.msra.mxu0 0.0
  %536 = vmatprep.subr.mxu0 0.0
  %537 = vmatpush1.msra.mxu0 0.0
  %538 = vmatprep.subr.mxu0 0.0
  %539 = vmatpush1.msra.mxu0 0.0
  %540 = vmatprep.subr.mxu0 0.0
  %541 = vmatpush1.msra.mxu0 0.0
  %542 = vmatprep.subr.mxu0 0.0
  %543 = vmatpush1.msra.mxu0 0.0
  %544 = vmatprep.subr.mxu0 0.0
  %545 = vmatpush1.msra.mxu0 0.0
  %546 = vmatprep.subr.mxu0 0.0
  %547 = vmatpush1.msra.mxu0 0.0
  %548 = vmatprep.subr.mxu0 0.0
  %549 = vmatpush1.msra.mxu0 0.0
  %550 = vmatprep.subr.mxu0 0.0
  %551 = vmatpush1.msra.mxu0 0.0
  %552 = vmatprep.subr.mxu0 0.0
  %553 = vmatpush1.msra.mxu0 0.0
  %554 = vmatprep.subr.mxu0 0.0
  %555 = vmatpush1.msra.mxu0 0.0
  %556 = vmatprep.subr.mxu0 0.0
  %557 = vmatpush1.msra.mxu0 0.0
  %558 = vmatprep.subr.mxu0 0.0
  %559 = vmatpush1.msra.mxu0 0.0
  %560 = vmatprep.subr.mxu0 0.0
  %561 = vmatpush1.msra.mxu0 0.0
  %562 = vmatprep.subr.mxu0 0.0
  %563 = vmatpush1.msra.mxu0 0.0
  %564 = vmatprep.subr.mxu0 0.0
  %565 = vmatpush1.msra.mxu0 0.0
  %566 = vmatprep.subr.mxu0 0.0
  %567 = vmatpush1.msra.mxu0 0.0
  %568 = vmatprep.subr.mxu0 0.0
  %569 = vmatpush1.msra.mxu0 0.0
  %570 = vmatprep.subr.mxu0 0.0
  %571 = vmatpush1.msra.mxu0 0.0
  %572 = vmatprep.subr.mxu0 0.0
  %573 = vmatpush1.msra.mxu0 0.0
  %574 = vmatprep.subr.mxu0 0.0
  %575 = vmatpush1.msra.mxu0 0.0
  %576 = vmatprep.mubr.f32.mxu0 0.0
  %v577 = vand.u32 %v507, 4294901760
  %v578 = vsub.f32 %v507, %v577
  %v579 = vand.u32 %v578, 4294901760
  %v580 = vsub.f32 %v578, %v579
  %v581 = vand.u32 %v580, 4294901760
  %582 = vmatmul.mubr.f32.gmra.mrb[0].mxu0 %v581
  %v583 = vpop.f32.mrb[0].mxu0
  %v584 = vadd.f32 0.0, %v583
  %v585 = vpop.f32.mrb[0].mxu0
  %586 = vdwg.mxu0
  %587 = vmatprep.subr.mxu0 0.0
  %v588 = vand.u32 %v25, 4294901760
  %v589 = vsub.f32 %v25, %v588
  %v590 = vand.u32 %v589, 4294901760
  %v591 = vsub.f32 %v589, %v590
  %v592 = vand.u32 %v591, 4294901760
  %593 = vmatpush1.msra.mxu0 %v592
  %594 = vmatprep.subr.mxu0 0.0
  %v595 = vand.u32 %v26, 4294901760
  %v596 = vsub.f32 %v26, %v595
  %v597 = vand.u32 %v596, 4294901760
  %v598 = vsub.f32 %v596, %v597
  %v599 = vand.u32 %v598, 4294901760
  %600 = vmatpush1.msra.mxu0 %v599
  %601 = vmatprep.subr.mxu0 0.0
  %v602 = vand.u32 %v27, 4294901760
  %v603 = vsub.f32 %v27, %v602
  %v604 = vand.u32 %v603, 4294901760
  %v605 = vsub.f32 %v603, %v604
  %v606 = vand.u32 %v605, 4294901760
  %607 = vmatpush1.msra.mxu0 %v606
  %608 = vmatprep.subr.mxu0 0.0
  %609 = vmatpush1.msra.mxu0 0.0
  %610 = vmatprep.subr.mxu0 0.0
  %611 = vmatpush1.msra.mxu0 0.0
  %612 = vmatprep.subr.mxu0 0.0
  %613 = vmatpush1.msra.mxu0 0.0
  %614 = vmatprep.subr.mxu0 0.0
  %615 = vmatpush1.msra.mxu0 0.0
  %616 = vmatprep.subr.mxu0 0.0
  %617 = vmatpush1.msra.mxu0 0.0
  %618 = vmatprep.subr.mxu0 0.0
  %619 = vmatpush1.msra.mxu0 0.0
  %620 = vmatprep.subr.mxu0 0.0
  %621 = vmatpush1.msra.mxu0 0.0
  %622 = vmatprep.subr.mxu0 0.0
  %623 = vmatpush1.msra.mxu0 0.0
  %624 = vmatprep.subr.mxu0 0.0
  %625 = vmatpush1.msra.mxu0 0.0
  %626 = vmatprep.subr.mxu0 0.0
  %627 = vmatpush1.msra.mxu0 0.0
  %628 = vmatprep.subr.mxu0 0.0
  %629 = vmatpush1.msra.mxu0 0.0
  %630 = vmatprep.subr.mxu0 0.0
  %631 = vmatpush1.msra.mxu0 0.0
  %632 = vmatprep.subr.mxu0 0.0
  %633 = vmatpush1.msra.mxu0 0.0
  %634 = vmatprep.subr.mxu0 0.0
  %635 = vmatpush1.msra.mxu0 0.0
  %636 = vmatprep.subr.mxu0 0.0
  %637 = vmatpush1.msra.mxu0 0.0
  %638 = vmatprep.subr.mxu0 0.0
  %639 = vmatpush1.msra.mxu0 0.0
  %640 = vmatprep.subr.mxu0 0.0
  %641 = vmatpush1.msra.mxu0 0.0
  %642 = vmatprep.subr.mxu0 0.0
  %643 = vmatpush1.msra.mxu0 0.0
  %644 = vmatprep.subr.mxu0 0.0
  %645 = vmatpush1.msra.mxu0 0.0
  %646 = vmatprep.subr.mxu0 0.0
  %647 = vmatpush1.msra.mxu0 0.0
  %648 = vmatprep.subr.mxu0 0.0
  %649 = vmatpush1.msra.mxu0 0.0
  %650 = vmatprep.subr.mxu0 0.0
  %651 = vmatpush1.msra.mxu0 0.0
  %652 = vmatprep.subr.mxu0 0.0
  %653 = vmatpush1.msra.mxu0 0.0
  %654 = vmatprep.subr.mxu0 0.0
  %655 = vmatpush1.msra.mxu0 0.0
  %656 = vmatprep.subr.mxu0 0.0
  %657 = vmatpush1.msra.mxu0 0.0
  %658 = vmatprep.subr.mxu0 0.0
  %659 = vmatpush1.msra.mxu0 0.0
  %660 = vmatprep.subr.mxu0 0.0
  %661 = vmatpush1.msra.mxu0 0.0
  %662 = vmatprep.subr.mxu0 0.0
  %663 = vmatpush1.msra.mxu0 0.0
  %664 = vmatprep.subr.mxu0 0.0
  %665 = vmatpush1.msra.mxu0 0.0
  %666 = vmatprep.mubr.f32.mxu0 0.0
  %v667 = vand.u32 %v507, 4294901760
  %668 = vmatmul.mubr.f32.gmra.mrb[0].mxu0 %v667
  %v669 = vpop.f32.mrb[0].mxu0
  %v670 = vadd.f32 %v584, %v669
  %v671 = vpop.f32.mrb[0].mxu0
  %672 = vdwg.mxu0
  %673 = vmatprep.subr.mxu0 0.0
  %v674 = vand.u32 %v25, 4294901760
  %v675 = vsub.f32 %v25, %v674
  %676 = vmatpush1.msra.mxu0 %v675
  %677 = vmatprep.subr.mxu0 0.0
  %v678 = vand.u32 %v26, 4294901760
  %v679 = vsub.f32 %v26, %v678
  %680 = vmatpush1.msra.mxu0 %v679
  %681 = vmatprep.subr.mxu0 0.0
  %v682 = vand.u32 %v27, 4294901760
  %v683 = vsub.f32 %v27, %v682
  %684 = vmatpush1.msra.mxu0 %v683
  %685 = vmatprep.subr.mxu0 0.0
  %686 = vmatpush1.msra.mxu0 0.0
  %687 = vmatprep.subr.mxu0 0.0
  %688 = vmatpush1.msra.mxu0 0.0
  %689 = vmatprep.subr.mxu0 0.0
  %690 = vmatpush1.msra.mxu0 0.0
  %691 = vmatprep.subr.mxu0 0.0
  %692 = vmatpush1.msra.mxu0 0.0
  %693 = vmatprep.subr.mxu0 0.0
  %694 = vmatpush1.msra.mxu0 0.0
  %695 = vmatprep.subr.mxu0 0.0
  %696 = vmatpush1.msra.mxu0 0.0
  %697 = vmatprep.subr.mxu0 0.0
  %698 = vmatpush1.msra.mxu0 0.0
  %699 = vmatprep.subr.mxu0 0.0
  %700 = vmatpush1.msra.mxu0 0.0
  %701 = vmatprep.subr.mxu0 0.0
  %702 = vmatpush1.msra.mxu0 0.0
  %703 = vmatprep.subr.mxu0 0.0
  %704 = vmatpush1.msra.mxu0 0.0
  %705 = vmatprep.subr.mxu0 0.0
  %706 = vmatpush1.msra.mxu0 0.0
  %707 = vmatprep.subr.mxu0 0.0
  %708 = vmatpush1.msra.mxu0 0.0
  %709 = vmatprep.subr.mxu0 0.0
  %710 = vmatpush1.msra.mxu0 0.0
  %711 = vmatprep.subr.mxu0 0.0
  %712 = vmatpush1.msra.mxu0 0.0
  %713 = vmatprep.subr.mxu0 0.0
  %714 = vmatpush1.msra.mxu0 0.0
  %715 = vmatprep.subr.mxu0 0.0
  %716 = vmatpush1.msra.mxu0 0.0
  %717 = vmatprep.subr.mxu0 0.0
  %718 = vmatpush1.msra.mxu0 0.0
  %719 = vmatprep.subr.mxu0 0.0
  %720 = vmatpush1.msra.mxu0 0.0
  %721 = vmatprep.subr.mxu0 0.0
  %722 = vmatpush1.msra.mxu0 0.0
  %723 = vmatprep.subr.mxu0 0.0
  %724 = vmatpush1.msra.mxu0 0.0
  %725 = vmatprep.subr.mxu0 0.0
  %726 = vmatpush1.msra.mxu0 0.0
  %727 = vmatprep.subr.mxu0 0.0
  %728 = vmatpush1.msra.mxu0 0.0
  %729 = vmatprep.subr.mxu0 0.0
  %730 = vmatpush1.msra.mxu0 0.0
  %731 = vmatprep.subr.mxu0 0.0
  %732 = vmatpush1.msra.mxu0 0.0
  %733 = vmatprep.subr.mxu0 0.0
  %734 = vmatpush1.msra.mxu0 0.0
  %735 = vmatprep.subr.mxu0 0.0
  %736 = vmatpush1.msra.mxu0 0.0
  %737 = vmatprep.subr.mxu0 0.0
  %738 = vmatpush1.msra.mxu0 0.0
  %739 = vmatprep.subr.mxu0 0.0
  %740 = vmatpush1.msra.mxu0 0.0
  %741 = vmatprep.subr.mxu0 0.0
  %742 = vmatpush1.msra.mxu0 0.0
  %743 = vmatprep.mubr.f32.mxu0 0.0
  %v744 = vand.u32 %v507, 4294901760
  %v745 = vsub.f32 %v507, %v744
  %746 = vmatmul.mubr.f32.gmra.mrb[0].mxu0 %v745
  %v747 = vpop.f32.mrb[0].mxu0
  %v748 = vadd.f32 %v670, %v747
  %v749 = vpop.f32.mrb[0].mxu0
  %750 = vdwg.mxu0
  %751 = vmatprep.subr.mxu0 0.0
  %v752 = vand.u32 %v25, 4294901760
  %753 = vmatpush1.msra.mxu0 %v752
  %754 = vmatprep.subr.mxu0 0.0
  %v755 = vand.u32 %v26, 4294901760
  %756 = vmatpush1.msra.mxu0 %v755
  %757 = vmatprep.subr.mxu0 0.0
  %v758 = vand.u32 %v27, 4294901760
  %759 = vmatpush1.msra.mxu0 %v758
  %760 = vmatprep.subr.mxu0 0.0
  %761 = vmatpush1.msra.mxu0 0.0
  %762 = vmatprep.subr.mxu0 0.0
  %763 = vmatpush1.msra.mxu0 0.0
  %764 = vmatprep.subr.mxu0 0.0
  %765 = vmatpush1.msra.mxu0 0.0
  %766 = vmatprep.subr.mxu0 0.0
  %767 = vmatpush1.msra.mxu0 0.0
  %768 = vmatprep.subr.mxu0 0.0
  %769 = vmatpush1.msra.mxu0 0.0
  %770 = vmatprep.subr.mxu0 0.0
  %771 = vmatpush1.msra.mxu0 0.0
  %772 = vmatprep.subr.mxu0 0.0
  %773 = vmatpush1.msra.mxu0 0.0
  %774 = vmatprep.subr.mxu0 0.0
  %775 = vmatpush1.msra.mxu0 0.0
  %776 = vmatprep.subr.mxu0 0.0
  %777 = vmatpush1.msra.mxu0 0.0
  %778 = vmatprep.subr.mxu0 0.0
  %779 = vmatpush1.msra.mxu0 0.0
  %780 = vmatprep.subr.mxu0 0.0
  %781 = vmatpush1.msra.mxu0 0.0
  %782 = vmatprep.subr.mxu0 0.0
  %783 = vmatpush1.msra.mxu0 0.0
  %784 = vmatprep.subr.mxu0 0.0
  %785 = vmatpush1.msra.mxu0 0.0
  %786 = vmatprep.subr.mxu0 0.0
  %787 = vmatpush1.msra.mxu0 0.0
  %788 = vmatprep.subr.mxu0 0.0
  %789 = vmatpush1.msra.mxu0 0.0
  %790 = vmatprep.subr.mxu0 0.0
  %791 = vmatpush1.msra.mxu0 0.0
  %792 = vmatprep.subr.mxu0 0.0
  %793 = vmatpush1.msra.mxu0 0.0
  %794 = vmatprep.subr.mxu0 0.0
  %795 = vmatpush1.msra.mxu0 0.0
  %796 = vmatprep.subr.mxu0 0.0
  %797 = vmatpush1.msra.mxu0 0.0
  %798 = vmatprep.subr.mxu0 0.0
  %799 = vmatpush1.msra.mxu0 0.0
  %800 = vmatprep.subr.mxu0 0.0
  %801 = vmatpush1.msra.mxu0 0.0
  %802 = vmatprep.subr.mxu0 0.0
  %803 = vmatpush1.msra.mxu0 0.0
  %804 = vmatprep.subr.mxu0 0.0
  %805 = vmatpush1.msra.mxu0 0.0
  %806 = vmatprep.subr.mxu0 0.0
  %807 = vmatpush1.msra.mxu0 0.0
  %808 = vmatprep.subr.mxu0 0.0
  %809 = vmatpush1.msra.mxu0 0.0
  %810 = vmatprep.subr.mxu0 0.0
  %811 = vmatpush1.msra.mxu0 0.0
  %812 = vmatprep.subr.mxu0 0.0
  %813 = vmatpush1.msra.mxu0 0.0
  %814 = vmatprep.subr.mxu0 0.0
  %815 = vmatpush1.msra.mxu0 0.0
  %816 = vmatprep.subr.mxu0 0.0
  %817 = vmatpush1.msra.mxu0 0.0
  %818 = vmatprep.mubr.f32.mxu0 0.0
  %v819 = vand.u32 %v507, 4294901760
  %v820 = vsub.f32 %v507, %v819
  %v821 = vand.u32 %v820, 4294901760
  %822 = vmatmul.mubr.f32.gmra.mrb[0].mxu0 %v821
  %v823 = vpop.f32.mrb[0].mxu0
  %v824 = vadd.f32 %v748, %v823
  %v825 = vpop.f32.mrb[0].mxu0
  %826 = vdwg.mxu0
  %827 = vmatprep.subr.mxu0 0.0
  %v828 = vand.u32 %v25, 4294901760
  %v829 = vsub.f32 %v25, %v828
  %v830 = vand.u32 %v829, 4294901760
  %831 = vmatpush1.msra.mxu0 %v830
  %832 = vmatprep.subr.mxu0 0.0
  %v833 = vand.u32 %v26, 4294901760
  %v834 = vsub.f32 %v26, %v833
  %v835 = vand.u32 %v834, 4294901760
  %836 = vmatpush1.msra.mxu0 %v835
  %837 = vmatprep.subr.mxu0 0.0
  %v838 = vand.u32 %v27, 4294901760
  %v839 = vsub.f32 %v27, %v838
  %v840 = vand.u32 %v839, 4294901760
  %841 = vmatpush1.msra.mxu0 %v840
  %842 = vmatprep.subr.mxu0 0.0
  %843 = vmatpush1.msra.mxu0 0.0
  %844 = vmatprep.subr.mxu0 0.0
  %845 = vmatpush1.msra.mxu0 0.0
  %846 = vmatprep.subr.mxu0 0.0
  %847 = vmatpush1.msra.mxu0 0.0
  %848 = vmatprep.subr.mxu0 0.0
  %849 = vmatpush1.msra.mxu0 0.0
  %850 = vmatprep.subr.mxu0 0.0
  %851 = vmatpush1.msra.mxu0 0.0
  %852 = vmatprep.subr.mxu0 0.0
  %853 = vmatpush1.msra.mxu0 0.0
  %854 = vmatprep.subr.mxu0 0.0
  %855 = vmatpush1.msra.mxu0 0.0
  %856 = vmatprep.subr.mxu0 0.0
  %857 = vmatpush1.msra.mxu0 0.0
  %858 = vmatprep.subr.mxu0 0.0
  %859 = vmatpush1.msra.mxu0 0.0
  %860 = vmatprep.subr.mxu0 0.0
  %861 = vmatpush1.msra.mxu0 0.0
  %862 = vmatprep.subr.mxu0 0.0
  %863 = vmatpush1.msra.mxu0 0.0
  %864 = vmatprep.subr.mxu0 0.0
  %865 = vmatpush1.msra.mxu0 0.0
  %866 = vmatprep.subr.mxu0 0.0
  %867 = vmatpush1.msra.mxu0 0.0
  %868 = vmatprep.subr.mxu0 0.0
  %869 = vmatpush1.msra.mxu0 0.0
  %870 = vmatprep.subr.mxu0 0.0
  %871 = vmatpush1.msra.mxu0 0.0
  %872 = vmatprep.subr.mxu0 0.0
  %873 = vmatpush1.msra.mxu0 0.0
  %874 = vmatprep.subr.mxu0 0.0
  %875 = vmatpush1.msra.mxu0 0.0
  %876 = vmatprep.subr.mxu0 0.0
  %877 = vmatpush1.msra.mxu0 0.0
  %878 = vmatprep.subr.mxu0 0.0
  %879 = vmatpush1.msra.mxu0 0.0
  %880 = vmatprep.subr.mxu0 0.0
  %881 = vmatpush1.msra.mxu0 0.0
  %882 = vmatprep.subr.mxu0 0.0
  %883 = vmatpush1.msra.mxu0 0.0
  %884 = vmatprep.subr.mxu0 0.0
  %885 = vmatpush1.msra.mxu0 0.0
  %886 = vmatprep.subr.mxu0 0.0
  %887 = vmatpush1.msra.mxu0 0.0
  %888 = vmatprep.subr.mxu0 0.0
  %889 = vmatpush1.msra.mxu0 0.0
  %890 = vmatprep.subr.mxu0 0.0
  %891 = vmatpush1.msra.mxu0 0.0
  %892 = vmatprep.subr.mxu0 0.0
  %893 = vmatpush1.msra.mxu0 0.0
  %894 = vmatprep.subr.mxu0 0.0
  %895 = vmatpush1.msra.mxu0 0.0
  %896 = vmatprep.subr.mxu0 0.0
  %897 = vmatpush1.msra.mxu0 0.0
  %898 = vmatprep.subr.mxu0 0.0
  %899 = vmatpush1.msra.mxu0 0.0
  %900 = vmatprep.mubr.f32.mxu0 0.0
  %v901 = vand.u32 %v507, 4294901760
  %902 = vmatmul.mubr.f32.gmra.mrb[0].mxu0 %v901
  %v903 = vpop.f32.mrb[0].mxu0
  %v904 = vadd.f32 %v824, %v903
  %v905 = vpop.f32.mrb[0].mxu0
  %906 = vdwg.mxu0
  %907 = vmatprep.subr.mxu0 0.0
  %v908 = vand.u32 %v25, 4294901760
  %909 = vmatpush1.msra.mxu0 %v908
  %910 = vmatprep.subr.mxu0 0.0
  %v911 = vand.u32 %v26, 4294901760
  %912 = vmatpush1.msra.mxu0 %v911
  %913 = vmatprep.subr.mxu0 0.0
  %v914 = vand.u32 %v27, 4294901760
  %915 = vmatpush1.msra.mxu0 %v914
  %916 = vmatprep.subr.mxu0 0.0
  %917 = vmatpush1.msra.mxu0 0.0
  %918 = vmatprep.subr.mxu0 0.0
  %919 = vmatpush1.msra.mxu0 0.0
  %920 = vmatprep.subr.mxu0 0.0
  %921 = vmatpush1.msra.mxu0 0.0
  %922 = vmatprep.subr.mxu0 0.0
  %923 = vmatpush1.msra.mxu0 0.0
  %924 = vmatprep.subr.mxu0 0.0
  %925 = vmatpush1.msra.mxu0 0.0
  %926 = vmatprep.subr.mxu0 0.0
  %927 = vmatpush1.msra.mxu0 0.0
  %928 = vmatprep.subr.mxu0 0.0
  %929 = vmatpush1.msra.mxu0 0.0
  %930 = vmatprep.subr.mxu0 0.0
  %931 = vmatpush1.msra.mxu0 0.0
  %932 = vmatprep.subr.mxu0 0.0
  %933 = vmatpush1.msra.mxu0 0.0
  %934 = vmatprep.subr.mxu0 0.0
  %935 = vmatpush1.msra.mxu0 0.0
  %936 = vmatprep.subr.mxu0 0.0
  %937 = vmatpush1.msra.mxu0 0.0
  %938 = vmatprep.subr.mxu0 0.0
  %939 = vmatpush1.msra.mxu0 0.0
  %940 = vmatprep.subr.mxu0 0.0
  %941 = vmatpush1.msra.mxu0 0.0
  %942 = vmatprep.subr.mxu0 0.0
  %943 = vmatpush1.msra.mxu0 0.0
  %944 = vmatprep.subr.mxu0 0.0
  %945 = vmatpush1.msra.mxu0 0.0
  %946 = vmatprep.subr.mxu0 0.0
  %947 = vmatpush1.msra.mxu0 0.0
  %948 = vmatprep.subr.mxu0 0.0
  %949 = vmatpush1.msra.mxu0 0.0
  %950 = vmatprep.subr.mxu0 0.0
  %951 = vmatpush1.msra.mxu0 0.0
  %952 = vmatprep.subr.mxu0 0.0
  %953 = vmatpush1.msra.mxu0 0.0
  %954 = vmatprep.subr.mxu0 0.0
  %955 = vmatpush1.msra.mxu0 0.0
  %956 = vmatprep.subr.mxu0 0.0
  %957 = vmatpush1.msra.mxu0 0.0
  %958 = vmatprep.subr.mxu0 0.0
  %959 = vmatpush1.msra.mxu0 0.0
  %960 = vmatprep.subr.mxu0 0.0
  %961 = vmatpush1.msra.mxu0 0.0
  %962 = vmatprep.subr.mxu0 0.0
  %963 = vmatpush1.msra.mxu0 0.0
  %964 = vmatprep.subr.mxu0 0.0
  %965 = vmatpush1.msra.mxu0 0.0
  %966 = vmatprep.subr.mxu0 0.0
  %967 = vmatpush1.msra.mxu0 0.0
  %968 = vmatprep.subr.mxu0 0.0
  %969 = vmatpush1.msra.mxu0 0.0
  %970 = vmatprep.subr.mxu0 0.0
  %971 = vmatpush1.msra.mxu0 0.0
  %972 = vmatprep.subr.mxu0 0.0
  %973 = vmatpush1.msra.mxu0 0.0
  %974 = vmatprep.mubr.f32.mxu0 0.0
  %v975 = vand.u32 %v507, 4294901760
  %976 = vmatmul.mubr.f32.gmra.mrb[0].mxu0 %v975
  %v977 = vpop.f32.mrb[0].mxu0
  %v978 = vadd.f32 %v904, %v977
  %v979 = vpop.f32.mrb[0].mxu0
  %980 = vdwg.mxu0
  %981 = vst [vmem:[%s4] sm:$0xff] %v502
  %982 = vst [vmem:[%s3] sm:$0xff] %v978
  %p983 = scmp.lt.s32.totalorder 0, 0
  // Predicated region
  $region18: #{layer_module_forward.1} parent=0 // pred_check
    %p984 = pneg %p983
  $region19: #{layer_module_forward.1} parent=0 // pred_check_branch
    %986 = sbr.rel (%p984) target = $region21
  $region20: #{layer_module_forward.1} parent=0 // pred_region
    %v987 = vld [vmem:[#allocation2] sm:$0xff]
    %988 = vmin.xlane.f32.xlu0 %v978
    %v989 = vpop.xlane.xlu0 %988
    %v990 = vmin.f32 %v987, %v989
    %vm991 = vcmask 7168
    %992 = vst.msk [vmem:[#allocation2] sm:$0xff] %vm991, %v990
    %v993 = vld [vmem:[#allocation3] sm:$0xff]
    %994 = vmax.xlane.f32.xlu0 %v502
    %v995 = vpop.xlane.xlu0 %994
    %v996 = vmax.f32 %v993, %v995
    %997 = vst.msk [vmem:[#allocation3] sm:$0xff] %vm991, %v996
    %v998 = vld [vmem:[#allocation4] sm:$0xff]
    %999 = vmax.xlane.f32.xlu0 %v978
    %v1000 = vpop.xlane.xlu0 %999
    %v1001 = vmax.f32 %v998, %v1000
    %1002 = vst.msk [vmem:[#allocation4] sm:$0xff] %vm991, %v1001
  $region21: #{layer_module_forward.1} parent=0 // pred_fallthru
    _
  // Predicated region
  $region22: #{layer_module_forward.1} parent=0 // pred_check
    %p1003 = pneg %p17
  $region23: #{layer_module_forward.1} parent=0 // pred_check_branch
    %1005 = sbr.rel (%p1003) target = $region25
  $region24: #{layer_module_forward.1} parent=0 // pred_region
    %v1006 = vlaneseq
    %v1007 = vand.u32 %v1006, 127
    %vm1008 = vcmp.lt.s32.totalorder %v1007, 25
    %v1009 = vld [vmem:[#allocation2] sm:$0xff]
    %v1010 = vsel %vm1008, 1, 0
    %vm1011 = vcmp.eq.s32.totalorder %v1010, 1
    %v1012 = vsel %vm1011, %v978, inf
    %1013 = vmin.xlane.f32.xlu0 %v1012
    %v1014 = vpop.xlane.xlu0 %1013
    %v1015 = vmin.f32 %v1009, %v1014
    %vm1016 = vcmask 7168
    %1017 = vst.msk [vmem:[#allocation2] sm:$0xff] %vm1016, %v1015
    %v1018 = vld [vmem:[#allocation3] sm:$0xff]
    %v1019 = vsel %vm1011, %v502, -inf
    %1020 = vmax.xlane.f32.xlu0 %v1019
    %v1021 = vpop.xlane.xlu0 %1020
    %v1022 = vmax.f32 %v1018, %v1021
    %1023 = vst.msk [vmem:[#allocation3] sm:$0xff] %vm1016, %v1022
    %v1024 = vld [vmem:[#allocation4] sm:$0xff]
    %v1025 = vsel %vm1011, %v978, -inf
    %1026 = vmax.xlane.f32.xlu0 %v1025
    %v1027 = vpop.xlane.xlu0 %1026
    %v1028 = vmax.f32 %v1024, %v1027
    %1029 = vst.msk [vmem:[#allocation4] sm:$0xff] %vm1016, %v1028
    %vm1030 = vcmp.eq.s32.totalorder %v1007, 0
    %v1031 = vld [vmem:[#allocation2] sm:$0xff]
    %1033 = vset.pattern.permute.xlu0 0
    %1034 = vperm.xlu0 %1033, %v1031
    %v1035 = vpop.permute.xlu0 %1034
    %v1037 = vsel %vm1030, %v1035, 0.0
    %vm1038 = vcmp.eq.s32.totalorder %v1007, 1
    %v1039 = vld [vmem:[#allocation3] sm:$0xff]
    %1041 = vset.pattern.permute.xlu0 0
    %1042 = vperm.xlu0 %1041, %v1039
    %v1043 = vpop.permute.xlu0 %1042
    %v1045 = vsel %vm1038, %v1043, %v1037
    %vm1046 = vcmp.eq.s32.totalorder %v1007, 2
    %v1047 = vld [vmem:[#allocation4] sm:$0xff]
    %1049 = vset.pattern.permute.xlu0 0
    %1050 = vperm.xlu0 %1049, %v1047
    %v1051 = vpop.permute.xlu0 %1050
    %v1053 = vsel %vm1046, %v1051, %v1045
    %1054 = vst [vmem:[%s5] sm:$0xff] %v1053
  $region25: #{layer_module_forward.1} parent=0 // pred_fallthru
    _
  // Predicated region
  $region26: #{layer_module_forward.1} parent=0 // pred_check
    _
  $region27: #{layer_module_forward.1} parent=0 // pred_check_branch
    %1056 = sbr.rel (0) target = $region29
  $region28: #{layer_module_forward.1} parent=0 // pred_region
    _
  $region29: #{layer_module_forward.1} parent=0 // pred_fallthru
    _
  // Predicated region
  $region30: #{layer_module_forward.1} parent=0 // pred_check
    _
  $region31: #{layer_module_forward.1} parent=0 // pred_check_branch
    %1058 = sbr.rel (0) target = $region33
  $region32: #{layer_module_forward.1} parent=0 // pred_region
    _
  $region33: #{layer_module_forward.1} parent=0 // pred_fallthru
    _
  // Predicated region
  $region34: #{layer_module_forward.1} parent=0 // pred_check
    _
  $region35: #{layer_module_forward.1} parent=0 // pred_check_branch
    %1060 = sbr.rel (0) target = $region37
  $region36: #{layer_module_forward.1} parent=0 // pred_region
    _
  $region37: #{layer_module_forward.1} parent=0 // pred_fallthru
    _
  // Predicated region
  $region38: #{layer_module_forward.1} parent=0 // pred_check
    _
  $region39: #{layer_module_forward.1} parent=0 // pred_check_branch
    %1062 = sbr.rel (0) target = $region41
  $region40: #{layer_module_forward.1} parent=0 // pred_region
    _
  $region41: #{layer_module_forward.1} parent=0 // pred_fallthru
    _
  // Predicated region
  $region42: #{layer_module_forward.1} parent=0 // pred_check
    _
  $region43: #{layer_module_forward.1} parent=0 // pred_check_branch
    %1064 = sbr.rel (0) target = $region45
  $region44: #{layer_module_forward.1} parent=0 // pred_region
    _
  $region45: #{layer_module_forward.1} parent=0 // pred_fallthru
    _
  // Predicated region
  $region46: #{layer_module_forward.1} parent=0 // pred_check
    _
  $region47: #{layer_module_forward.1} parent=0 // pred_check_branch
    %1066 = sbr.rel (0) target = $region49
  $region48: #{layer_module_forward.1} parent=0 // pred_region
    _
  $region49: #{layer_module_forward.1} parent=0 // pred_fallthru
    _

</llo_original>
